<compile_context>
chip_gen: v7x
topology: tpu7x:2x2x1
jax: 0.10.0
libtpu: 0.0.40
codegen_flags: <defaults>
</compile_context>

<pallas_src>
import functools

import jax
import jax.numpy as jnp
from jax import lax
from jax.experimental import pallas as pl
from jax.experimental.pallas import tpu as pltpu


def _round_up(n, m):
    return ((n + m - 1) // m) * m


def _make_kernel(compute_dtype):
    # Contract x's last axis with w's last axis (w is stored (out, in), PyTorch-style),
    # so no explicit transpose is needed anywhere.
    dn = (((1,), (1,)), ((), ()))

    def kernel(x_ref, w1_ref, b1_ref, w2_ref, b2_ref, w3_ref, b3_ref, o_ref):
        # In-kernel casts (no-ops for f32 compute) keep the wrapper launch-free.
        x = x_ref[...].astype(compute_dtype)                       # (tb, in)
        w1 = w1_ref[...].astype(compute_dtype)                     # (hid, in)
        w2 = w2_ref[...].astype(compute_dtype)                     # (hid, hid)
        w3 = w3_ref[...].astype(compute_dtype)                     # (out, hid)

        h1 = lax.dot_general(x, w1, dn, preferred_element_type=jnp.float32)
        h1 = jnp.maximum(h1 + b1_ref[...], 0.0)                    # (tb, hid), f32

        h2 = lax.dot_general(h1.astype(compute_dtype), w2, dn,
                             preferred_element_type=jnp.float32)
        h2 = jnp.maximum(h2 + b2_ref[...], 0.0)                    # (tb, hid), f32

        o_ref[...] = lax.dot_general(h2.astype(compute_dtype), w3, dn,
                                     preferred_element_type=jnp.float32) + b3_ref[...]

    return kernel


def _choose_tb(B, cap=2048):
    # Fewer, fatter grid steps; but if B is large enough, make >= 2 steps so a v7x
    # megacore can shard the batch axis across its 2 TensorCores.
    cand = min(cap, _round_up(pl.cdiv(B, 2), 128))
    return cand if cand < B else B          # single full-extent tile otherwise


def qnetwork_forward(x, params, *, compute_dtype=jnp.float32, tb=None):
    """x: (B, input_size) float32.  params: w* stored (out, in), b* stored (1, out).
    Returns (B, output_size) float32 — same layout/semantics as the PyTorch module."""
    w1, b1, w2, b2, w3, b3 = (params["w1"], params["b1"], params["w2"],
                              params["b2"], params["w3"], params["b3"])
    B, input_size = x.shape
    hidden = w1.shape[0]
    out_size = w3.shape[0]

    if tb is None:
        tb = _choose_tb(B)
    else:
        tb = min(tb, B)
        if tb != B and tb % 8 != 0:
            raise ValueError("tb must be a multiple of 8 (sublane tiling) or equal B")

    grid = (pl.cdiv(B, tb),)

    kernel = _make_kernel(compute_dtype)

    out = pl.pallas_call(
        kernel,
        out_shape=jax.ShapeDtypeStruct((B, out_size), jnp.float32),
        grid_spec=pltpu.PrefetchScalarGridSpec(
            num_scalar_prefetch=0,
            grid=grid,
            in_specs=[
                pl.BlockSpec((tb, input_size), lambda i: (i, 0)),      # x tile
                pl.BlockSpec((hidden, input_size), lambda i: (0, 0)),  # w1 resident
                pl.BlockSpec((1, hidden), lambda i: (0, 0)),           # b1 resident
                pl.BlockSpec((hidden, hidden), lambda i: (0, 0)),      # w2 resident
                pl.BlockSpec((1, hidden), lambda i: (0, 0)),           # b2 resident
                pl.BlockSpec((out_size, hidden), lambda i: (0, 0)),    # w3 resident
                pl.BlockSpec((1, out_size), lambda i: (0, 0)),         # b3 resident
            ],
            out_specs=pl.BlockSpec((tb, out_size), lambda i: (i, 0)),
        ),
        compiler_params=pltpu.CompilerParams(
            # Independent batch tiles: v7x can shard grid steps across its 2 TCs.
            dimension_semantics=("parallel",),
        ),
    )(x, w1, b1, w2, b2, w3, b3)

    return out


def init_params(key, input_size, hidden_size, output_size):
    """nn.Linear-style init: uniform(-1/sqrt(fan_in), 1/sqrt(fan_in)).
    Weights stored (out, in) (same as PyTorch), biases stored (1, out)."""
    ks = jax.random.split(key, 6)

    def linear(kw, kb, fan_in, fan_out):
        bound = 1.0 / jnp.sqrt(fan_in)
        w = jax.random.uniform(kw, (fan_out, fan_in), jnp.float32, -bound, bound)
        b = jax.random.uniform(kb, (1, fan_out), jnp.float32, -bound, bound)
        return w, b

    w1, b1 = linear(ks[0], ks[1], input_size, hidden_size)
    w2, b2 = linear(ks[2], ks[3], hidden_size, hidden_size)
    w3, b3 = linear(ks[4], ks[5], hidden_size, output_size)
    return {"w1": w1, "b1": b1, "w2": w2, "b2": b2, "w3": w3, "b3": b3}


def qnetwork_reference(x, p):
    h1 = jnp.maximum(x @ p["w1"].T + p["b1"], 0.0)
    h2 = jnp.maximum(h1 @ p["w2"].T + p["b2"], 0.0)
    return h2 @ p["w3"].T + p["b3"]


if __name__ == "__main__":
    key = jax.random.PRNGKey(0)
    k_params, k_x, k_x2 = jax.random.split(key, 3)

    batch = 8
    input_size = 16
    hidden_size = 32
    output_size = 8

    params = init_params(k_params, input_size, hidden_size, output_size)
    x = jax.random.normal(k_x, (batch, input_size), jnp.float32)
    ref = qnetwork_reference(x, params)

    # f32 path, single-tile grid: exact match with the reference.
    out = jax.block_until_ready(qnetwork_forward(x, params))
    assert out.shape == (batch, output_size)
    assert jnp.allclose(out, ref, atol=1e-5, rtol=1e-5)

    # bf16 compute path (v6e/v7x MXU fast path): f32 accumulation, looser tolerance.
    out_bf16 = jax.block_until_ready(
        qnetwork_forward(x, params, compute_dtype=jnp.bfloat16))
    assert out_bf16.shape == (batch, output_size)
    assert jnp.allclose(out_bf16, ref, atol=5e-2, rtol=5e-2)

    # Multi-step grid with an uneven edge block (exercises DMA clipping + 2 TC path).
    b2_batch = 300
    x2 = jax.random.normal(k_x2, (b2_batch, input_size), jnp.float32)
    ref2 = qnetwork_reference(x2, params)
    out2 = jax.block_until_ready(qnetwork_forward(x2, params))
    assert out2.shape == (b2_batch, output_size)
    assert jnp.allclose(out2, ref2, atol=1e-5, rtol=1e-5)

    print("KERNEL_OK")
</pallas_src>

<mosaic_0001>
module attributes {stable_mosaic.version = 11 : i64} {
  func.func @kernel(%arg0: i32, %arg1: memref<8x16xf32, #tpu.memory_space<vmem>>, %arg2: memref<32x16xf32, #tpu.memory_space<vmem>>, %arg3: memref<1x32xf32, #tpu.memory_space<vmem>>, %arg4: memref<32x32xf32, #tpu.memory_space<vmem>>, %arg5: memref<1x32xf32, #tpu.memory_space<vmem>>, %arg6: memref<8x32xf32, #tpu.memory_space<vmem>>, %arg7: memref<1x8xf32, #tpu.memory_space<vmem>>, %arg8: memref<8x8xf32, #tpu.memory_space<vmem>>) attributes {dimension_semantics = [#tpu.dimension_semantics<parallel>], iteration_bounds = array<i64: 1>, scalar_prefetch = 0 : i64, scratch_operands = 0 : i64, tpu.core_type = #tpu.core_type<tc>, window_params = [{transform_indices = @transform_0, window_bounds = array<i64: 8, 16>}, {pipeline_mode = #tpu.pipeline_mode<synchronous>, transform_indices = @transform_1, window_bounds = array<i64: 32, 16>}, {pipeline_mode = #tpu.pipeline_mode<synchronous>, transform_indices = @transform_2, window_bounds = array<i64: 1, 32>}, {pipeline_mode = #tpu.pipeline_mode<synchronous>, transform_indices = @transform_3, window_bounds = array<i64: 32, 32>}, {pipeline_mode = #tpu.pipeline_mode<synchronous>, transform_indices = @transform_4, window_bounds = array<i64: 1, 32>}, {pipeline_mode = #tpu.pipeline_mode<synchronous>, transform_indices = @transform_5, window_bounds = array<i64: 8, 32>}, {pipeline_mode = #tpu.pipeline_mode<synchronous>, transform_indices = @transform_6, window_bounds = array<i64: 1, 8>}, {transform_indices = @transform_7, window_bounds = array<i64: 8, 8>}]} {
    %c0 = arith.constant 0 : index
    %c0_0 = arith.constant 0 : index
    %0 = vector.load %arg1[%c0, %c0_0] : memref<8x16xf32, #tpu.memory_space<vmem>>, vector<8x16xf32>
    %c0_1 = arith.constant 0 : index
    %c0_2 = arith.constant 0 : index
    %1 = vector.load %arg2[%c0_1, %c0_2] : memref<32x16xf32, #tpu.memory_space<vmem>>, vector<32x16xf32>
    %c0_3 = arith.constant 0 : index
    %c0_4 = arith.constant 0 : index
    %2 = vector.load %arg4[%c0_3, %c0_4] : memref<32x32xf32, #tpu.memory_space<vmem>>, vector<32x32xf32>
    %c0_5 = arith.constant 0 : index
    %c0_6 = arith.constant 0 : index
    %3 = vector.load %arg6[%c0_5, %c0_6] : memref<8x32xf32, #tpu.memory_space<vmem>>, vector<8x32xf32>
    %cst = arith.constant dense<0.000000e+00> : vector<8x32xf32>
    %4 = tpu.matmul %0, %1, %cst {dimension_numbers = #tpu.dot_dimension_numbers<[1], [1], [0], [0], [0, 0, 1, 0], [], []>} : vector<8x16xf32>, vector<32x16xf32>, vector<8x32xf32> -> vector<8x32xf32>
    %c0_7 = arith.constant 0 : index
    %c0_8 = arith.constant 0 : index
    %5 = vector.load %arg3[%c0_7, %c0_8] : memref<1x32xf32, #tpu.memory_space<vmem>>, vector<1x32xf32>
    %6 = vector.broadcast %5 : vector<1x32xf32> to vector<8x32xf32>
    %7 = arith.addf %4, %6 : vector<8x32xf32>
    %cst_9 = arith.constant 0.000000e+00 : f32
    %8 = vector.broadcast %cst_9 : f32 to vector<8x32xf32>
    %9 = arith.maximumf %7, %8 : vector<8x32xf32>
    %cst_10 = arith.constant dense<0.000000e+00> : vector<8x32xf32>
    %10 = tpu.matmul %9, %2, %cst_10 {dimension_numbers = #tpu.dot_dimension_numbers<[1], [1], [0], [0], [0, 0, 1, 0], [], []>} : vector<8x32xf32>, vector<32x32xf32>, vector<8x32xf32> -> vector<8x32xf32>
    %c0_11 = arith.constant 0 : index
    %c0_12 = arith.constant 0 : index
    %11 = vector.load %arg5[%c0_11, %c0_12] : memref<1x32xf32, #tpu.memory_space<vmem>>, vector<1x32xf32>
    %12 = vector.broadcast %11 : vector<1x32xf32> to vector<8x32xf32>
    %13 = arith.addf %10, %12 : vector<8x32xf32>
    %cst_13 = arith.constant 0.000000e+00 : f32
    %14 = vector.broadcast %cst_13 : f32 to vector<8x32xf32>
    %15 = arith.maximumf %13, %14 : vector<8x32xf32>
    %cst_14 = arith.constant dense<0.000000e+00> : vector<8x8xf32>
    %16 = tpu.matmul %15, %3, %cst_14 {dimension_numbers = #tpu.dot_dimension_numbers<[1], [1], [0], [0], [0, 0, 1, 0], [], []>} : vector<8x32xf32>, vector<8x32xf32>, vector<8x8xf32> -> vector<8x8xf32>
    %c0_15 = arith.constant 0 : index
    %c0_16 = arith.constant 0 : index
    %17 = vector.load %arg7[%c0_15, %c0_16] : memref<1x8xf32, #tpu.memory_space<vmem>>, vector<1x8xf32>
    %18 = vector.broadcast %17 : vector<1x8xf32> to vector<8x8xf32>
    %19 = arith.addf %16, %18 : vector<8x8xf32>
    %c0_17 = arith.constant 0 : index
    %c0_18 = arith.constant 0 : index
    %20 = vector.load %arg8[%c0_17, %c0_18] : memref<8x8xf32, #tpu.memory_space<vmem>>, vector<8x8xf32>
    tpu.vector_store %arg8[%c0_17, %c0_18], %19 {strides = array<i32>} : memref<8x8xf32, #tpu.memory_space<vmem>>, vector<8x8xf32>,
    return
  }
  func.func @transform_0(%arg0: i32) -> (i32, i32) {
    %c0_i32 = arith.constant 0 : i32
    %c0_i32_0 = arith.constant 0 : i32
    return %arg0, %c0_i32 : i32, i32
  }
  func.func @transform_1(%arg0: i32) -> (i32, i32) {
    %c0_i32 = arith.constant 0 : i32
    %c0_i32_0 = arith.constant 0 : i32
    %c0_i32_1 = arith.constant 0 : i32
    return %c0_i32, %c0_i32_0 : i32, i32
  }
  func.func @transform_2(%arg0: i32) -> (i32, i32) {
    %c0_i32 = arith.constant 0 : i32
    %c0_i32_0 = arith.constant 0 : i32
    %c0_i32_1 = arith.constant 0 : i32
    return %c0_i32, %c0_i32_0 : i32, i32
  }
  func.func @transform_3(%arg0: i32) -> (i32, i32) {
    %c0_i32 = arith.constant 0 : i32
    %c0_i32_0 = arith.constant 0 : i32
    %c0_i32_1 = arith.constant 0 : i32
    return %c0_i32, %c0_i32_0 : i32, i32
  }
  func.func @transform_4(%arg0: i32) -> (i32, i32) {
    %c0_i32 = arith.constant 0 : i32
    %c0_i32_0 = arith.constant 0 : i32
    %c0_i32_1 = arith.constant 0 : i32
    return %c0_i32, %c0_i32_0 : i32, i32
  }
  func.func @transform_5(%arg0: i32) -> (i32, i32) {
    %c0_i32 = arith.constant 0 : i32
    %c0_i32_0 = arith.constant 0 : i32
    %c0_i32_1 = arith.constant 0 : i32
    return %c0_i32, %c0_i32_0 : i32, i32
  }
  func.func @transform_6(%arg0: i32) -> (i32, i32) {
    %c0_i32 = arith.constant 0 : i32
    %c0_i32_0 = arith.constant 0 : i32
    %c0_i32_1 = arith.constant 0 : i32
    return %c0_i32, %c0_i32_0 : i32, i32
  }
  func.func @transform_7(%arg0: i32) -> (i32, i32) {
    %c0_i32 = arith.constant 0 : i32
    %c0_i32_0 = arith.constant 0 : i32
    return %arg0, %c0_i32 : i32, i32
  }
}

</mosaic_0001>

<llo_original>
// kernel: tpu_custom_call.1
$region0: #{tpu_custom_call.1}
  #allocation0 [shape = 'u32[]', space=smem, size = 0x4, offset = 0x4, fixed_abs, tag = 'smem constant byte address 0x4 - core index']
  #allocation1 [shape = 'u32[144,128]{1,0:T(1,128)}', space=vmem, size = 0x12000, scoped, tag = 'internal scratch']
  %s0 = inlined_call_operand.vmem [shape: f32[8,16], index: 0, kind: input, shape index: {}]
  %s1 = inlined_call_operand.vmem [shape: f32[32,16], index: 1, kind: input, shape index: {}]
  %s2 = inlined_call_operand.vmem [shape: f32[1,32], index: 2, kind: input, shape index: {}]
  %s3 = inlined_call_operand.vmem [shape: f32[32,32], index: 3, kind: input, shape index: {}]
  %s4 = inlined_call_operand.vmem [shape: f32[1,32], index: 4, kind: input, shape index: {}]
  %s5 = inlined_call_operand.vmem [shape: f32[8,32], index: 5, kind: input, shape index: {}]
  %s6 = inlined_call_operand.vmem [shape: f32[1,8], index: 6, kind: input, shape index: {}]
  %s7 = inlined_call_operand.hbm [shape: f32[8,8], index: 7, kind: output, shape index: {}]
  %s8 = sld [smem:[#allocation0]]
  $region38: #{tpu_custom_call.1} parent=0
    _
  %s10 = ssub.s32 1, %s8
  %s11 = scalar_select 0, %s10, %s8
  $region1: #{tpu_custom_call.1} parent=0
    #allocation2 [shape = 'u8[4096]{0}', space=vmem, size = 0x1000, scoped, tag = 'output window, operand 0, single buffered']
    #allocation3 [shape = 's32[1]{0}', space=sflag, size = 0x4, scoped, tag = 'scoped memory for tpu_custom_call.1']
    %12 = vsyncpa [#allocation3], 0
    // Predicated region
    $region2: #{tpu_custom_call.1} parent=1 // pred_check
      _
    $region3: #{tpu_custom_call.1} parent=1 // pred_check_branch
      %14 = sbr.rel (0) target = $region5
    $region4: #{tpu_custom_call.1} parent=1 // pred_region
      _
    $region5: #{tpu_custom_call.1} parent=1 // pred_fallthru
      _
    // Predicated region
    $region6: #{tpu_custom_call.1} parent=1 // pred_check
      _
    $region7: #{tpu_custom_call.1} parent=1 // pred_check_branch
      %16 = sbr.rel (0) target = $region9
    $region8: #{tpu_custom_call.1} parent=1 // pred_region
      _
    $region9: #{tpu_custom_call.1} parent=1 // pred_fallthru
      _
    // Predicated region
    $region10: #{tpu_custom_call.1} parent=1 // pred_check
      _
    $region11: #{tpu_custom_call.1} parent=1 // pred_check_branch
      %18 = sbr.rel (0) target = $region13
    $region12: #{tpu_custom_call.1} parent=1 // pred_region
      _
    $region13: #{tpu_custom_call.1} parent=1 // pred_fallthru
      _
    // Predicated region
    $region14: #{tpu_custom_call.1} parent=1 // pred_check
      _
    $region15: #{tpu_custom_call.1} parent=1 // pred_check_branch
      %20 = sbr.rel (0) target = $region17
    $region16: #{tpu_custom_call.1} parent=1 // pred_region
      _
    $region17: #{tpu_custom_call.1} parent=1 // pred_fallthru
      _
    // Predicated region
    $region18: #{tpu_custom_call.1} parent=1 // pred_check
      _
    $region19: #{tpu_custom_call.1} parent=1 // pred_check_branch
      %22 = sbr.rel (0) target = $region21
    $region20: #{tpu_custom_call.1} parent=1 // pred_region
      _
    $region21: #{tpu_custom_call.1} parent=1 // pred_fallthru
      _
    // Predicated region
    $region22: #{tpu_custom_call.1} parent=1 // pred_check
      _
    $region23: #{tpu_custom_call.1} parent=1 // pred_check_branch
      %24 = sbr.rel (0) target = $region25
    $region24: #{tpu_custom_call.1} parent=1 // pred_region
      _
    $region25: #{tpu_custom_call.1} parent=1 // pred_fallthru
      _
    // Predicated region
    $region26: #{tpu_custom_call.1} parent=1 // pred_check
      _
    $region27: #{tpu_custom_call.1} parent=1 // pred_check_branch
      %26 = sbr.rel (0) target = $region29
    $region28: #{tpu_custom_call.1} parent=1 // pred_region
      _
    $region29: #{tpu_custom_call.1} parent=1 // pred_fallthru
      _
    %v27 = vld [vmem:[%s0] sm:$0xff]
    %v28 = vld [vmem:[%s1] sm:$0xff]
    %v29 = vld [vmem:[%s1 + $0x8] sm:$0xff]
    %v30 = vld [vmem:[%s1 + $0x10] sm:$0xff]
    %v31 = vld [vmem:[%s1 + $0x18] sm:$0xff]
    %v32 = vld [vmem:[%s3] sm:$0xff]
    %v33 = vld [vmem:[%s3 + $0x8] sm:$0xff]
    %v34 = vld [vmem:[%s3 + $0x10] sm:$0xff]
    %v35 = vld [vmem:[%s3 + $0x18] sm:$0xff]
    %v36 = vld [vmem:[%s5] sm:$0xff]
    %v37 = vld [vmem:[%s2] sm:$0x1]
    %v39 = vlaneseq
    %v40 = vshrl.u32 %v39, 7
    %v41 = vsub.s32 0, %v40
    %v42 = vrot.slane %v37, %v41
    %vm44 = vcmask 130048
    %v46 = vsel %vm44, %v27, 0
    %v49 = vsel %vm44, %v28, 0
    %v52 = vsel %vm44, %v29, 0
    %v55 = vsel %vm44, %v30, 0
    %v58 = vsel %vm44, %v31, 0
    %60 = vmatprep.subr.mxu0 0.0
    %61 = vmatpush1.xpose.msra.mxu0 %v49
    %62 = vmatprep.subr.mxu0 0.0
    %63 = vmatpush1.xpose.msra.mxu0 %v52
    %64 = vmatprep.subr.mxu0 0.0
    %65 = vmatpush1.xpose.msra.mxu0 %v55
    %66 = vmatprep.subr.mxu0 0.0
    %67 = vmatpush1.xpose.msra.mxu0 %v58
    %68 = vmatprep.subr.mxu0 0.0
    %69 = vmatpush1.xpose.msra.mxu0 0.0
    %70 = vmatprep.subr.mxu0 0.0
    %71 = vmatpush1.xpose.msra.mxu0 0.0
    %72 = vmatprep.subr.mxu0 0.0
    %73 = vmatpush1.xpose.msra.mxu0 0.0
    %74 = vmatprep.subr.mxu0 0.0
    %75 = vmatpush1.xpose.msra.mxu0 0.0
    %76 = vmatprep.subr.mxu0 0.0
    %77 = vmatpush1.xpose.msra.mxu0 0.0
    %78 = vmatprep.subr.mxu0 0.0
    %79 = vmatpush1.xpose.msra.mxu0 0.0
    %80 = vmatprep.subr.mxu0 0.0
    %81 = vmatpush1.xpose.msra.mxu0 0.0
    %82 = vmatprep.subr.mxu0 0.0
    %83 = vmatpush1.xpose.msra.mxu0 0.0
    %84 = vmatprep.subr.mxu0 0.0
    %85 = vmatpush1.xpose.msra.mxu0 0.0
    %86 = vmatprep.subr.mxu0 0.0
    %87 = vmatpush1.xpose.msra.mxu0 0.0
    %88 = vmatprep.subr.mxu0 0.0
    %89 = vmatpush1.xpose.msra.mxu0 0.0
    %90 = vmatprep.subr.mxu0 0.0
    %91 = vmatpush1.xpose.msra.mxu0 0.0
    %92 = vmatprep.subr.mxu0 0.0
    %93 = vmatpush1.xpose.msra.mxu0 0.0
    %94 = vmatprep.subr.mxu0 0.0
    %95 = vmatpush1.xpose.msra.mxu0 0.0
    %96 = vmatprep.subr.mxu0 0.0
    %97 = vmatpush1.xpose.msra.mxu0 0.0
    %98 = vmatprep.subr.mxu0 0.0
    %99 = vmatpush1.xpose.msra.mxu0 0.0
    %100 = vmatprep.subr.mxu0 0.0
    %101 = vmatpush1.xpose.msra.mxu0 0.0
    %102 = vmatprep.subr.mxu0 0.0
    %103 = vmatpush1.xpose.msra.mxu0 0.0
    %104 = vmatprep.subr.mxu0 0.0
    %105 = vmatpush1.xpose.msra.mxu0 0.0
    %106 = vmatprep.subr.mxu0 0.0
    %107 = vmatpush1.xpose.msra.mxu0 0.0
    %108 = vmatprep.subr.mxu0 0.0
    %109 = vmatpush1.xpose.msra.mxu0 0.0
    %110 = vmatprep.subr.mxu0 0.0
    %111 = vmatpush1.xpose.msra.mxu0 0.0
    %112 = vmatprep.subr.mxu0 0.0
    %113 = vmatpush1.xpose.msra.mxu0 0.0
    %114 = vmatprep.subr.mxu0 0.0
    %115 = vmatpush1.xpose.msra.mxu0 0.0
    %116 = vmatprep.subr.mxu0 0.0
    %117 = vmatpush1.xpose.msra.mxu0 0.0
    %118 = vmatprep.subr.mxu0 0.0
    %119 = vmatpush1.xpose.msra.mxu0 0.0
    %120 = vmatprep.subr.mxu0 0.0
    %121 = vmatpush1.xpose.msra.mxu0 0.0
    %122 = vmatprep.subr.mxu0 0.0
    %123 = vmatpush1.xpose.msra.mxu0 0.0
    %124 = vmatprep.mubr.f32.mxu0 0.0
    %125 = vmatmul.mubr.f32.gmra.mrb[0].mxu0 %v46
    %v126 = vpop.f32.mrb[0].mxu0
    %v127 = vadd.f32 %v42, %v126
    %v128 = vpop.f32.mrb[0].mxu0
    %129 = vdwg.mxu0
    %v130 = vmax.f32 %v127, 0.0
    %v131 = vld [vmem:[%s4] sm:$0x1]
    %v133 = vlaneseq
    %v134 = vshrl.u32 %v133, 7
    %v135 = vsub.s32 0, %v134
    %v136 = vrot.slane %v131, %v135
    %vm138 = vcmask 261120
    %v140 = vsel %vm138, %v130, 0
    %v143 = vsel %vm138, %v32, 0
    %v146 = vsel %vm138, %v33, 0
    %v149 = vsel %vm138, %v34, 0
    %v152 = vsel %vm138, %v35, 0
    %154 = vmatprep.subr.mxu0 0.0
    %155 = vmatpush1.xpose.msra.mxu0 %v143
    %156 = vmatprep.subr.mxu0 0.0
    %157 = vmatpush1.xpose.msra.mxu0 %v146
    %158 = vmatprep.subr.mxu0 0.0
    %159 = vmatpush1.xpose.msra.mxu0 %v149
    %160 = vmatprep.subr.mxu0 0.0
    %161 = vmatpush1.xpose.msra.mxu0 %v152
    %162 = vmatprep.subr.mxu0 0.0
    %163 = vmatpush1.xpose.msra.mxu0 0.0
    %164 = vmatprep.subr.mxu0 0.0
    %165 = vmatpush1.xpose.msra.mxu0 0.0
    %166 = vmatprep.subr.mxu0 0.0
    %167 = vmatpush1.xpose.msra.mxu0 0.0
    %168 = vmatprep.subr.mxu0 0.0
    %169 = vmatpush1.xpose.msra.mxu0 0.0
    %170 = vmatprep.subr.mxu0 0.0
    %171 = vmatpush1.xpose.msra.mxu0 0.0
    %172 = vmatprep.subr.mxu0 0.0
    %173 = vmatpush1.xpose.msra.mxu0 0.0
    %174 = vmatprep.subr.mxu0 0.0
    %175 = vmatpush1.xpose.msra.mxu0 0.0
    %176 = vmatprep.subr.mxu0 0.0
    %177 = vmatpush1.xpose.msra.mxu0 0.0
    %178 = vmatprep.subr.mxu0 0.0
    %179 = vmatpush1.xpose.msra.mxu0 0.0
    %180 = vmatprep.subr.mxu0 0.0
    %181 = vmatpush1.xpose.msra.mxu0 0.0
    %182 = vmatprep.subr.mxu0 0.0
    %183 = vmatpush1.xpose.msra.mxu0 0.0
    %184 = vmatprep.subr.mxu0 0.0
    %185 = vmatpush1.xpose.msra.mxu0 0.0
    %186 = vmatprep.subr.mxu0 0.0
    %187 = vmatpush1.xpose.msra.mxu0 0.0
    %188 = vmatprep.subr.mxu0 0.0
    %189 = vmatpush1.xpose.msra.mxu0 0.0
    %190 = vmatprep.subr.mxu0 0.0
    %191 = vmatpush1.xpose.msra.mxu0 0.0
    %192 = vmatprep.subr.mxu0 0.0
    %193 = vmatpush1.xpose.msra.mxu0 0.0
    %194 = vmatprep.subr.mxu0 0.0
    %195 = vmatpush1.xpose.msra.mxu0 0.0
    %196 = vmatprep.subr.mxu0 0.0
    %197 = vmatpush1.xpose.msra.mxu0 0.0
    %198 = vmatprep.subr.mxu0 0.0
    %199 = vmatpush1.xpose.msra.mxu0 0.0
    %200 = vmatprep.subr.mxu0 0.0
    %201 = vmatpush1.xpose.msra.mxu0 0.0
    %202 = vmatprep.subr.mxu0 0.0
    %203 = vmatpush1.xpose.msra.mxu0 0.0
    %204 = vmatprep.subr.mxu0 0.0
    %205 = vmatpush1.xpose.msra.mxu0 0.0
    %206 = vmatprep.subr.mxu0 0.0
    %207 = vmatpush1.xpose.msra.mxu0 0.0
    %208 = vmatprep.subr.mxu0 0.0
    %209 = vmatpush1.xpose.msra.mxu0 0.0
    %210 = vmatprep.subr.mxu0 0.0
    %211 = vmatpush1.xpose.msra.mxu0 0.0
    %212 = vmatprep.subr.mxu0 0.0
    %213 = vmatpush1.xpose.msra.mxu0 0.0
    %214 = vmatprep.subr.mxu0 0.0
    %215 = vmatpush1.xpose.msra.mxu0 0.0
    %216 = vmatprep.subr.mxu0 0.0
    %217 = vmatpush1.xpose.msra.mxu0 0.0
    %218 = vmatprep.mubr.f32.mxu0 0.0
    %219 = vmatmul.mubr.f32.gmra.mrb[0].mxu0 %v140
    %v220 = vpop.f32.mrb[0].mxu0
    %v221 = vadd.f32 %v136, %v220
    %v222 = vpop.f32.mrb[0].mxu0
    %223 = vdwg.mxu0
    %v224 = vmax.f32 %v221, 0.0
    %v225 = vld [vmem:[%s6] sm:$0x1]
    %v227 = vlaneseq
    %v228 = vshrl.u32 %v227, 7
    %v229 = vsub.s32 0, %v228
    %v230 = vrot.slane %v225, %v229
    %v233 = vsel %vm138, %v224, 0
    %v236 = vsel %vm138, %v36, 0
    %238 = vmatprep.subr.mxu0 0.0
    %239 = vmatpush1.xpose.msra.mxu0 %v236
    %240 = vmatprep.subr.mxu0 0.0
    %241 = vmatpush1.xpose.msra.mxu0 0.0
    %242 = vmatprep.subr.mxu0 0.0
    %243 = vmatpush1.xpose.msra.mxu0 0.0
    %244 = vmatprep.subr.mxu0 0.0
    %245 = vmatpush1.xpose.msra.mxu0 0.0
    %246 = vmatprep.subr.mxu0 0.0
    %247 = vmatpush1.xpose.msra.mxu0 0.0
    %248 = vmatprep.subr.mxu0 0.0
    %249 = vmatpush1.xpose.msra.mxu0 0.0
    %250 = vmatprep.subr.mxu0 0.0
    %251 = vmatpush1.xpose.msra.mxu0 0.0
    %252 = vmatprep.subr.mxu0 0.0
    %253 = vmatpush1.xpose.msra.mxu0 0.0
    %254 = vmatprep.subr.mxu0 0.0
    %255 = vmatpush1.xpose.msra.mxu0 0.0
    %256 = vmatprep.subr.mxu0 0.0
    %257 = vmatpush1.xpose.msra.mxu0 0.0
    %258 = vmatprep.subr.mxu0 0.0
    %259 = vmatpush1.xpose.msra.mxu0 0.0
    %260 = vmatprep.subr.mxu0 0.0
    %261 = vmatpush1.xpose.msra.mxu0 0.0
    %262 = vmatprep.subr.mxu0 0.0
    %263 = vmatpush1.xpose.msra.mxu0 0.0
    %264 = vmatprep.subr.mxu0 0.0
    %265 = vmatpush1.xpose.msra.mxu0 0.0
    %266 = vmatprep.subr.mxu0 0.0
    %267 = vmatpush1.xpose.msra.mxu0 0.0
    %268 = vmatprep.subr.mxu0 0.0
    %269 = vmatpush1.xpose.msra.mxu0 0.0
    %270 = vmatprep.subr.mxu0 0.0
    %271 = vmatpush1.xpose.msra.mxu0 0.0
    %272 = vmatprep.subr.mxu0 0.0
    %273 = vmatpush1.xpose.msra.mxu0 0.0
    %274 = vmatprep.subr.mxu0 0.0
    %275 = vmatpush1.xpose.msra.mxu0 0.0
    %276 = vmatprep.subr.mxu0 0.0
    %277 = vmatpush1.xpose.msra.mxu0 0.0
    %278 = vmatprep.subr.mxu0 0.0
    %279 = vmatpush1.xpose.msra.mxu0 0.0
    %280 = vmatprep.subr.mxu0 0.0
    %281 = vmatpush1.xpose.msra.mxu0 0.0
    %282 = vmatprep.subr.mxu0 0.0
    %283 = vmatpush1.xpose.msra.mxu0 0.0
    %284 = vmatprep.subr.mxu0 0.0
    %285 = vmatpush1.xpose.msra.mxu0 0.0
    %286 = vmatprep.subr.mxu0 0.0
    %287 = vmatpush1.xpose.msra.mxu0 0.0
    %288 = vmatprep.subr.mxu0 0.0
    %289 = vmatpush1.xpose.msra.mxu0 0.0
    %290 = vmatprep.subr.mxu0 0.0
    %291 = vmatpush1.xpose.msra.mxu0 0.0
    %292 = vmatprep.subr.mxu0 0.0
    %293 = vmatpush1.xpose.msra.mxu0 0.0
    %294 = vmatprep.subr.mxu0 0.0
    %295 = vmatpush1.xpose.msra.mxu0 0.0
    %296 = vmatprep.subr.mxu0 0.0
    %297 = vmatpush1.xpose.msra.mxu0 0.0
    %298 = vmatprep.subr.mxu0 0.0
    %299 = vmatpush1.xpose.msra.mxu0 0.0
    %300 = vmatprep.subr.mxu0 0.0
    %301 = vmatpush1.xpose.msra.mxu0 0.0
    %302 = vmatprep.mubr.f32.mxu0 0.0
    %303 = vmatmul.mubr.f32.gmra.mrb[0].mxu0 %v233
    %v304 = vpop.f32.mrb[0].mxu0
    %v305 = vadd.f32 %v230, %v304
    %v306 = vpop.f32.mrb[0].mxu0
    %307 = vdwg.mxu0
    %vm308 = vcmask 64512
    %309 = vst.msk [vmem:[#allocation2] sm:$0xff] %vm308, %v305
    // Predicated region
    $region30: #{tpu_custom_call.1} parent=1 // pred_check
      _
    $region31: #{tpu_custom_call.1} parent=1 // pred_check_branch
      %311 = sbr.rel (0) target = $region33
    $region32: #{tpu_custom_call.1} parent=1 // pred_region
      %s313 = ssub.s32 128, 128
      %314 = vsyncadd [#allocation3], %s313
      %s316 = sshll.u32 [#allocation2], 4
      %s317 = int_to_ptr.vmem [resolvable:$true] %s316
      %319 = dma.vmem_to_hbm [thread:$0]  %s317, 128, %s7, [#allocation3]
    $region33: #{tpu_custom_call.1} parent=1 // pred_fallthru
      _
    // Predicated region
    $region34: #{tpu_custom_call.1} parent=1 // pred_check
      _
    $region35: #{tpu_custom_call.1} parent=1 // pred_check_branch
      %321 = sbr.rel (0) target = $region37
    $region36: #{tpu_custom_call.1} parent=1 // pred_region
      %322 = dma.done [#allocation3], 128
    $region37: #{tpu_custom_call.1} parent=1 // pred_fallthru
      _
    %323 = vsyncpa [#allocation3], 1

</llo_original>
